<compile_context>
chip_gen: v7x
topology: tpu7x:2x2x1
jax: 0.10.0
libtpu: 0.0.40
codegen_flags: <defaults>
</compile_context>

<pallas_src>
import functools

import jax
import jax.numpy as jnp
from jax import lax
from jax.experimental import pallas as pl
from jax.experimental.pallas import tpu as pltpu


def _adapted_self_output_kernel(eps, h_ref, x_ref, wd_ref, bd_ref,
                                wdn_ref, bdn_ref, wup_ref, bup_ref,
                                g_ref, b_ref, out_ref):
    # h_ref/x_ref: (T, D) row tiles; all weight refs fully resident in VMEM.
    h = h_ref[...].astype(jnp.float32)

    # self_output.dense
    hd = jnp.dot(h, wd_ref[...], preferred_element_type=jnp.float32) + bd_ref[...]
    # self_output.dropout -> identity at inference
    # TODO(synk): dropout is a no-op here (eval mode); training-mode RNG masking not implemented.

    # adapter: PHM down-projection -> nonlinearity -> PHM up-projection, residual
    z = jnp.dot(hd, wdn_ref[...], preferred_element_type=jnp.float32) + bdn_ref[...]
    z = jnp.maximum(z, 0.0)   # ReLU non-linearity
    a = jnp.dot(z, wup_ref[...], preferred_element_type=jnp.float32) + bup_ref[...]
    hd = hd + a               # adapter residual connection

    # Add & LayerNorm over the hidden dim
    y = hd + x_ref[...].astype(jnp.float32)
    mean = jnp.mean(y, axis=-1, keepdims=True)
    yc = y - mean
    var = jnp.mean(yc * yc, axis=-1, keepdims=True)
    inv = lax.rsqrt(var + eps)
    out_ref[...] = (yc * inv * g_ref[...] + b_ref[...]).astype(out_ref.dtype)


def bert_compacter_adapted_self_output(hidden_states, input_tensor,
                                       dense_w, dense_b,
                                       phm_a_down, phm_b_down, down_b,
                                       phm_a_up, phm_b_up, up_b,
                                       ln_gamma, ln_beta,
                                       *, eps=1e-12, block_rows=8):
    """Pallas implementation of BertCompacterAdaptedSelfOutput.forward (inference)."""
    B, S, D = hidden_states.shape
    d_down = down_b.shape[0]

    # Materialize the Compacter PHM weights once (tiny, data-independent):
    #   W = sum_i kron(A_i, B_i)
    w_down = jnp.sum(jax.vmap(jnp.kron)(phm_a_down, phm_b_down), axis=0)  # (D, d_down)
    w_up = jnp.sum(jax.vmap(jnp.kron)(phm_a_up, phm_b_up), axis=0)        # (d_down, D)

    N = B * S
    T = block_rows
    n_tiles = pl.cdiv(N, T)
    Np = n_tiles * T

    h2 = hidden_states.reshape(N, D)
    x2 = input_tensor.reshape(N, D)
    if Np != N:
        pad = Np - N
        h2 = jnp.pad(h2, ((0, pad), (0, 0)))
        x2 = jnp.pad(x2, ((0, pad), (0, 0)))

    def full(shape):
        return pl.BlockSpec(shape, lambda i: (0,) * len(shape))

    row_spec = pl.BlockSpec((T, D), lambda i: (i, 0))

    kernel = functools.partial(_adapted_self_output_kernel, float(eps))

    out = pl.pallas_call(
        kernel,
        out_shape=jax.ShapeDtypeStruct((Np, D), hidden_states.dtype),
        grid_spec=pltpu.PrefetchScalarGridSpec(
            num_scalar_prefetch=0,
            grid=(n_tiles,),
            in_specs=[
                row_spec,              # hidden_states rows
                row_spec,              # input_tensor (residual) rows
                full((D, D)),          # dense weight   (VMEM-resident)
                full((1, D)),          # dense bias
                full((D, d_down)),     # adapter down weight
                full((1, d_down)),     # adapter down bias
                full((d_down, D)),     # adapter up weight
                full((1, D)),          # adapter up bias
                full((1, D)),          # LayerNorm gamma
                full((1, D)),          # LayerNorm beta
            ],
            out_specs=row_spec,
        ),
        compiler_params=pltpu.CompilerParams(
            dimension_semantics=("parallel",)),
    )(h2, x2,
      dense_w.astype(jnp.float32), dense_b.reshape(1, D).astype(jnp.float32),
      w_down.astype(jnp.float32), down_b.reshape(1, d_down).astype(jnp.float32),
      w_up.astype(jnp.float32), up_b.reshape(1, D).astype(jnp.float32),
      ln_gamma.reshape(1, D).astype(jnp.float32),
      ln_beta.reshape(1, D).astype(jnp.float32))

    return out[:N].reshape(B, S, D)


if __name__ == "__main__":
    key = jax.random.PRNGKey(0)
    ks = jax.random.split(key, 12)

    # 'tiny' BERT -> word_embedding_dim = 128 ; small sequence for the demo
    B, S, D = 2, 16, 128
    d_down = 32            # args.bert_adapter_down_size
    phm_dim = 4            # hypercomplex division (Compacter n)
    eps = 1e-12

    hidden = jax.random.normal(ks[0], (B, S, D), jnp.float32)
    inp = jax.random.normal(ks[1], (B, S, D), jnp.float32)

    dense_w = jax.random.normal(ks[2], (D, D), jnp.float32) * 0.02
    dense_b = jax.random.normal(ks[3], (D,), jnp.float32) * 0.02

    # PHM (Kronecker) factors for the adapter down / up projections
    A_dn = jax.random.normal(ks[4], (phm_dim, phm_dim, phm_dim), jnp.float32) * 0.1
    B_dn = jax.random.normal(ks[5], (phm_dim, D // phm_dim, d_down // phm_dim), jnp.float32) * 0.1
    b_dn = jax.random.normal(ks[6], (d_down,), jnp.float32) * 0.01
    A_up = jax.random.normal(ks[7], (phm_dim, phm_dim, phm_dim), jnp.float32) * 0.1
    B_up = jax.random.normal(ks[8], (phm_dim, d_down // phm_dim, D // phm_dim), jnp.float32) * 0.1
    b_up = jax.random.normal(ks[9], (D,), jnp.float32) * 0.01

    ln_gamma = 1.0 + 0.1 * jax.random.normal(ks[10], (D,), jnp.float32)
    ln_beta = 0.1 * jax.random.normal(ks[11], (D,), jnp.float32)

    out = bert_compacter_adapted_self_output(
        hidden, inp, dense_w, dense_b,
        A_dn, B_dn, b_dn, A_up, B_up, b_up,
        ln_gamma, ln_beta, eps=eps, block_rows=8)
    out = jax.block_until_ready(out)

    # pure-JAX reference of the PyTorch forward (eval mode)
    w_down_ref = jnp.sum(jax.vmap(jnp.kron)(A_dn, B_dn), axis=0)
    w_up_ref = jnp.sum(jax.vmap(jnp.kron)(A_up, B_up), axis=0)
    hd = hidden @ dense_w + dense_b
    z = jnp.maximum(hd @ w_down_ref + b_dn, 0.0)
    hd = hd + (z @ w_up_ref + b_up)
    y = hd + inp
    mean = y.mean(-1, keepdims=True)
    var = ((y - mean) ** 2).mean(-1, keepdims=True)
    ref = (y - mean) / jnp.sqrt(var + eps) * ln_gamma + ln_beta

    assert out.shape == (B, S, D), out.shape
    assert out.dtype == jnp.float32
    max_err = float(jnp.max(jnp.abs(out - ref)))
    assert max_err < 2e-2, f"mismatch vs reference, max abs err = {max_err}"

    print("KERNEL_OK")
</pallas_src>

<mosaic_0001>
module attributes {stable_mosaic.version = 11 : i64} {
  func.func @_adapted_self_output_kernel(%arg0: i32, %arg1: memref<8x128xf32, #tpu.memory_space<vmem>>, %arg2: memref<8x128xf32, #tpu.memory_space<vmem>>, %arg3: memref<128x128xf32, #tpu.memory_space<vmem>>, %arg4: memref<1x128xf32, #tpu.memory_space<vmem>>, %arg5: memref<128x32xf32, #tpu.memory_space<vmem>>, %arg6: memref<1x32xf32, #tpu.memory_space<vmem>>, %arg7: memref<32x128xf32, #tpu.memory_space<vmem>>, %arg8: memref<1x128xf32, #tpu.memory_space<vmem>>, %arg9: memref<1x128xf32, #tpu.memory_space<vmem>>, %arg10: memref<1x128xf32, #tpu.memory_space<vmem>>, %arg11: memref<8x128xf32, #tpu.memory_space<vmem>>) attributes {dimension_semantics = [#tpu.dimension_semantics<parallel>], iteration_bounds = array<i64: 4>, scalar_prefetch = 0 : i64, scratch_operands = 0 : i64, tpu.core_type = #tpu.core_type<tc>, window_params = [{transform_indices = @transform_0, window_bounds = array<i64: 8, 128>}, {transform_indices = @transform_1, window_bounds = array<i64: 8, 128>}, {pipeline_mode = #tpu.pipeline_mode<synchronous>, transform_indices = @transform_2, window_bounds = array<i64: 128, 128>}, {pipeline_mode = #tpu.pipeline_mode<synchronous>, transform_indices = @transform_3, window_bounds = array<i64: 1, 128>}, {pipeline_mode = #tpu.pipeline_mode<synchronous>, transform_indices = @transform_4, window_bounds = array<i64: 128, 32>}, {pipeline_mode = #tpu.pipeline_mode<synchronous>, transform_indices = @transform_5, window_bounds = array<i64: 1, 32>}, {pipeline_mode = #tpu.pipeline_mode<synchronous>, transform_indices = @transform_6, window_bounds = array<i64: 32, 128>}, {pipeline_mode = #tpu.pipeline_mode<synchronous>, transform_indices = @transform_7, window_bounds = array<i64: 1, 128>}, {pipeline_mode = #tpu.pipeline_mode<synchronous>, transform_indices = @transform_8, window_bounds = array<i64: 1, 128>}, {pipeline_mode = #tpu.pipeline_mode<synchronous>, transform_indices = @transform_9, window_bounds = array<i64: 1, 128>}, {transform_indices = @transform_10, window_bounds = array<i64: 8, 128>}]} {
    %c0 = arith.constant 0 : index
    %c0_0 = arith.constant 0 : index
    %0 = vector.load %arg1[%c0, %c0_0] : memref<8x128xf32, #tpu.memory_space<vmem>>, vector<8x128xf32>
    %c0_1 = arith.constant 0 : index
    %c0_2 = arith.constant 0 : index
    %1 = vector.load %arg3[%c0_1, %c0_2] : memref<128x128xf32, #tpu.memory_space<vmem>>, vector<128x128xf32>
    %cst = arith.constant dense<0.000000e+00> : vector<8x128xf32>
    %2 = tpu.matmul %0, %1, %cst {dimension_numbers = #tpu.dot_dimension_numbers<[1], [0], [0], [1], [0, 0, 1, 1], [], []>} : vector<8x128xf32>, vector<128x128xf32>, vector<8x128xf32> -> vector<8x128xf32>
    %c0_3 = arith.constant 0 : index
    %c0_4 = arith.constant 0 : index
    %3 = vector.load %arg4[%c0_3, %c0_4] : memref<1x128xf32, #tpu.memory_space<vmem>>, vector<1x128xf32>
    %4 = vector.broadcast %3 : vector<1x128xf32> to vector<8x128xf32>
    %5 = arith.addf %2, %4 : vector<8x128xf32>
    %c0_5 = arith.constant 0 : index
    %c0_6 = arith.constant 0 : index
    %6 = vector.load %arg5[%c0_5, %c0_6] : memref<128x32xf32, #tpu.memory_space<vmem>>, vector<128x32xf32>
    %cst_7 = arith.constant dense<0.000000e+00> : vector<8x32xf32>
    %7 = tpu.matmul %5, %6, %cst_7 {dimension_numbers = #tpu.dot_dimension_numbers<[1], [0], [0], [1], [0, 0, 1, 1], [], []>} : vector<8x128xf32>, vector<128x32xf32>, vector<8x32xf32> -> vector<8x32xf32>
    %c0_8 = arith.constant 0 : index
    %c0_9 = arith.constant 0 : index
    %8 = vector.load %arg6[%c0_8, %c0_9] : memref<1x32xf32, #tpu.memory_space<vmem>>, vector<1x32xf32>
    %9 = vector.broadcast %8 : vector<1x32xf32> to vector<8x32xf32>
    %10 = arith.addf %7, %9 : vector<8x32xf32>
    %cst_10 = arith.constant 0.000000e+00 : f32
    %11 = vector.broadcast %cst_10 : f32 to vector<8x32xf32>
    %12 = arith.maximumf %10, %11 : vector<8x32xf32>
    %c0_11 = arith.constant 0 : index
    %c0_12 = arith.constant 0 : index
    %13 = vector.load %arg7[%c0_11, %c0_12] : memref<32x128xf32, #tpu.memory_space<vmem>>, vector<32x128xf32>
    %cst_13 = arith.constant dense<0.000000e+00> : vector<8x128xf32>
    %14 = tpu.matmul %12, %13, %cst_13 {dimension_numbers = #tpu.dot_dimension_numbers<[1], [0], [0], [1], [0, 0, 1, 1], [], []>} : vector<8x32xf32>, vector<32x128xf32>, vector<8x128xf32> -> vector<8x128xf32>
    %c0_14 = arith.constant 0 : index
    %c0_15 = arith.constant 0 : index
    %15 = vector.load %arg8[%c0_14, %c0_15] : memref<1x128xf32, #tpu.memory_space<vmem>>, vector<1x128xf32>
    %16 = vector.broadcast %15 : vector<1x128xf32> to vector<8x128xf32>
    %17 = arith.addf %14, %16 : vector<8x128xf32>
    %18 = arith.addf %5, %17 : vector<8x128xf32>
    %c0_16 = arith.constant 0 : index
    %c0_17 = arith.constant 0 : index
    %19 = vector.load %arg2[%c0_16, %c0_17] : memref<8x128xf32, #tpu.memory_space<vmem>>, vector<8x128xf32>
    %20 = arith.addf %18, %19 : vector<8x128xf32>
    %cst_18 = arith.constant dense<0.000000e+00> : vector<8xf32>
    %21 = vector.multi_reduction <add>, %20, %cst_18 [1] : vector<8x128xf32> to vector<8xf32>
    %22 = vector.shape_cast %21 : vector<8xf32> to vector<8x1xf32>
    %cst_19 = arith.constant 1.280000e+02 : f32
    %23 = vector.broadcast %cst_19 : f32 to vector<8x1xf32>
    %24 = arith.divf %22, %23 : vector<8x1xf32>
    %25 = vector.broadcast %24 : vector<8x1xf32> to vector<8x128xf32>
    %26 = arith.subf %20, %25 : vector<8x128xf32>
    %27 = arith.mulf %26, %26 : vector<8x128xf32>
    %cst_20 = arith.constant dense<0.000000e+00> : vector<8xf32>
    %28 = vector.multi_reduction <add>, %27, %cst_20 [1] : vector<8x128xf32> to vector<8xf32>
    %29 = vector.shape_cast %28 : vector<8xf32> to vector<8x1xf32>
    %cst_21 = arith.constant 1.280000e+02 : f32
    %30 = vector.broadcast %cst_21 : f32 to vector<8x1xf32>
    %31 = arith.divf %29, %30 : vector<8x1xf32>
    %cst_22 = arith.constant 9.99999996E-13 : f32
    %32 = vector.broadcast %cst_22 : f32 to vector<8x1xf32>
    %33 = arith.addf %31, %32 : vector<8x1xf32>
    %34 = math.rsqrt %33 : vector<8x1xf32>
    %35 = vector.broadcast %34 : vector<8x1xf32> to vector<8x128xf32>
    %36 = arith.mulf %26, %35 : vector<8x128xf32>
    %c0_23 = arith.constant 0 : index
    %c0_24 = arith.constant 0 : index
    %37 = vector.load %arg9[%c0_23, %c0_24] : memref<1x128xf32, #tpu.memory_space<vmem>>, vector<1x128xf32>
    %38 = vector.broadcast %37 : vector<1x128xf32> to vector<8x128xf32>
    %39 = arith.mulf %36, %38 : vector<8x128xf32>
    %c0_25 = arith.constant 0 : index
    %c0_26 = arith.constant 0 : index
    %40 = vector.load %arg10[%c0_25, %c0_26] : memref<1x128xf32, #tpu.memory_space<vmem>>, vector<1x128xf32>
    %41 = vector.broadcast %40 : vector<1x128xf32> to vector<8x128xf32>
    %42 = arith.addf %39, %41 : vector<8x128xf32>
    %c0_27 = arith.constant 0 : index
    %c0_28 = arith.constant 0 : index
    %43 = vector.load %arg11[%c0_27, %c0_28] : memref<8x128xf32, #tpu.memory_space<vmem>>, vector<8x128xf32>
    tpu.vector_store %arg11[%c0_27, %c0_28], %42 {strides = array<i32>} : memref<8x128xf32, #tpu.memory_space<vmem>>, vector<8x128xf32>,
    return
  }
  func.func @transform_0(%arg0: i32) -> (i32, i32) {
    %c0_i32 = arith.constant 0 : i32
    %c0_i32_0 = arith.constant 0 : i32
    return %arg0, %c0_i32 : i32, i32
  }
  func.func @transform_1(%arg0: i32) -> (i32, i32) {
    %c0_i32 = arith.constant 0 : i32
    %c0_i32_0 = arith.constant 0 : i32
    return %arg0, %c0_i32 : i32, i32
  }
  func.func @transform_2(%arg0: i32) -> (i32, i32) {
    %c0_i32 = arith.constant 0 : i32
    %c0_i32_0 = arith.constant 0 : i32
    %c0_i32_1 = arith.constant 0 : i32
    return %c0_i32, %c0_i32_0 : i32, i32
  }
  func.func @transform_3(%arg0: i32) -> (i32, i32) {
    %c0_i32 = arith.constant 0 : i32
    %c0_i32_0 = arith.constant 0 : i32
    %c0_i32_1 = arith.constant 0 : i32
    return %c0_i32, %c0_i32_0 : i32, i32
  }
  func.func @transform_4(%arg0: i32) -> (i32, i32) {
    %c0_i32 = arith.constant 0 : i32
    %c0_i32_0 = arith.constant 0 : i32
    %c0_i32_1 = arith.constant 0 : i32
    return %c0_i32, %c0_i32_0 : i32, i32
  }
  func.func @transform_5(%arg0: i32) -> (i32, i32) {
    %c0_i32 = arith.constant 0 : i32
    %c0_i32_0 = arith.constant 0 : i32
    %c0_i32_1 = arith.constant 0 : i32
    return %c0_i32, %c0_i32_0 : i32, i32
  }
  func.func @transform_6(%arg0: i32) -> (i32, i32) {
    %c0_i32 = arith.constant 0 : i32
    %c0_i32_0 = arith.constant 0 : i32
    %c0_i32_1 = arith.constant 0 : i32
    return %c0_i32, %c0_i32_0 : i32, i32
  }
  func.func @transform_7(%arg0: i32) -> (i32, i32) {
    %c0_i32 = arith.constant 0 : i32
    %c0_i32_0 = arith.constant 0 : i32
    %c0_i32_1 = arith.constant 0 : i32
    return %c0_i32, %c0_i32_0 : i32, i32
  }
  func.func @transform_8(%arg0: i32) -> (i32, i32) {
    %c0_i32 = arith.constant 0 : i32
    %c0_i32_0 = arith.constant 0 : i32
    %c0_i32_1 = arith.constant 0 : i32
    return %c0_i32, %c0_i32_0 : i32, i32
  }
  func.func @transform_9(%arg0: i32) -> (i32, i32) {
    %c0_i32 = arith.constant 0 : i32
    %c0_i32_0 = arith.constant 0 : i32
    %c0_i32_1 = arith.constant 0 : i32
    return %c0_i32, %c0_i32_0 : i32, i32
  }
  func.func @transform_10(%arg0: i32) -> (i32, i32) {
    %c0_i32 = arith.constant 0 : i32
    %c0_i32_0 = arith.constant 0 : i32
    return %arg0, %c0_i32 : i32, i32
  }
}

</mosaic_0001>

<llo_original>
// kernel: tpu_custom_call.1
$region0: #{tpu_custom_call.1}
  #allocation0 [shape = 'u32[]', space=smem, size = 0x4, offset = 0x4, fixed_abs, tag = 'smem constant byte address 0x4 - core index']
  #allocation1 [shape = 'u32[144,128]{1,0:T(1,128)}', space=vmem, size = 0x12000, scoped, tag = 'internal scratch']
  %s0 = inlined_call_operand.vmem [shape: f32[32,128], index: 0, kind: input, shape index: {}]
  %s1 = inlined_call_operand.hbm [shape: f32[32,128], index: 1, kind: input, shape index: {}]
  %s2 = inlined_call_operand.vmem [shape: f32[128,128], index: 2, kind: input, shape index: {}]
  %s3 = inlined_call_operand.vmem [shape: f32[1,128], index: 3, kind: input, shape index: {}]
  %s4 = inlined_call_operand.vmem [shape: f32[128,32], index: 4, kind: input, shape index: {}]
  %s5 = inlined_call_operand.vmem [shape: f32[1,32], index: 5, kind: input, shape index: {}]
  %s6 = inlined_call_operand.hbm [shape: f32[32,128], index: 6, kind: input, shape index: {}]
  %s7 = inlined_call_operand.vmem [shape: f32[1,128], index: 7, kind: input, shape index: {}]
  %s8 = inlined_call_operand.vmem [shape: f32[1,128], index: 8, kind: input, shape index: {}]
  %s9 = inlined_call_operand.vmem [shape: f32[1,128], index: 9, kind: input, shape index: {}]
  %s10 = inlined_call_operand.hbm [shape: f32[32,128], index: 10, kind: output, shape index: {}]
  %s11 = sld [smem:[#allocation0]]
  $region81: #{tpu_custom_call.1} parent=0
    _
  %s13 = ssub.s32 1, %s11
  %s14 = scalar_select 0, %s13, %s11
  $region1: #{tpu_custom_call.1} parent=0
    #allocation2 [shape = 'u8[8192]{0}', space=vmem, size = 0x2000, scoped, tag = 'input window, operand 1']
    #allocation3 [shape = 's32[2]{0}', space=sflag, size = 0x8, scoped, tag = 'scoped memory for tpu_custom_call.1']
    #allocation4 [shape = 's32[2]{0}', space=sflag, size = 0x8, scoped, tag = 'scoped memory for tpu_custom_call.1']
    #allocation5 [shape = 'u8[16384]{0}', space=vmem, size = 0x4000, scoped, tag = 'input window, operand 6, single buffered']
    #allocation6 [shape = 's32[1]{0}', space=sflag, size = 0x4, scoped, tag = 'scoped memory for tpu_custom_call.1']
    #allocation7 [shape = 'u8[8192]{0}', space=vmem, size = 0x2000, scoped, tag = 'output window, operand 0']
    %15 = vsyncpa [#allocation3], 0
    %s16 = scalar_lea.sflag [#allocation3], 1
    %17 = vsyncpa %s16, 0
    %18 = vsyncpa [#allocation6], 0
    %19 = vsyncpa [#allocation4], 0
    %s20 = scalar_lea.sflag [#allocation4], 1
    %21 = vsyncpa %s20, 0
    loop: start=0, step=1, limit=6
    $region2: #{tpu_custom_call.1} parent=1 // loop_pre_header
      _
    $region3: #{tpu_custom_call.1} parent=1 // loop_header
      %s23 = sphi 0, %s27
      %p24 = scmp.ge.s32.totalorder %s23, 6
      %s33 = sphi 0, %s35
      %s36 = sphi 0, %s33
      %s37 = sphi 0, %s36
      %s53 = sphi 0, %s37
      %s59 = sphi 0, %s61
      %s62 = sphi 0, %s59
      %s63 = sphi 0, %s62
      %s79 = sphi 0, %s63
      %s83 = sphi 0, %s83
      %s85 = sphi 0, %s83
      %s86 = sphi 0, %s85
      %s100 = sphi 0, %s86
      %s104 = sphi 0, %s104
      %s106 = sphi 0, %s104
      %s107 = sphi 0, %s106
      %s121 = sphi 0, %s107
      %s125 = sphi 0, %s125
      %s127 = sphi 0, %s125
      %s128 = sphi 0, %s127
      %s142 = sphi 0, %s128
      %s146 = sphi 0, %s146
      %s148 = sphi 0, %s146
      %s149 = sphi 0, %s148
      %s163 = sphi 0, %s149
      %s167 = sphi 0, %s167
      %s169 = sphi 0, %s167
      %s170 = sphi 0, %s169
      %s184 = sphi 0, %s170
      %s188 = sphi 0, %s188
      %s190 = sphi 0, %s188
      %s191 = sphi 0, %s190
      %s205 = sphi 0, %s191
      %s209 = sphi 0, %s209
      %s211 = sphi 0, %s209
      %s212 = sphi 0, %s211
      %s226 = sphi 0, %s212
      %s230 = sphi 0, %s230
      %s232 = sphi 0, %s230
      %s233 = sphi 0, %s232
      %s247 = sphi 0, %s233
      %s253 = sphi 0, %s255
      %s256 = sphi 0, %s253
      %s257 = sphi 0, %s256
      %s273 = sphi 0, %s257
    $region4: #{tpu_custom_call.1} parent=1 // loop_header_branch
      %26 = sbr.rel (%p24) target = $region8
    $region5: #{tpu_custom_call.1} parent=1 // loop_body
      %s28 = ssub.s32 %s23, 1
      %s29 = ssub.s32 %s23, 2
      %s30 = sadd.s32 %s23, 1
      %s31 = ssub.s32 %s23, %s30
      %p32 = scmp.eq.s32.totalorder %s31, 0
      %s34 = sadd.s32 %s33, 1
      %s35 = scalar_select %p32, %s33, %s34
      %p38 = pneg %p32
      %p39 = scmp.eq.s32.totalorder %s23, 3
      %p40 = por %p38, %p39
      %p41 = scmp.ne.s32.totalorder %s33, %s36
      %p42 = scmp.eq.s32.totalorder %s23, 0
      %p43 = por %p41, %p42
      %p44 = scmp.ne.s32.totalorder %s33, %s36
      %p45 = scmp.eq.s32.totalorder %s28, 3
      %p46 = por %p44, %p45
      %p47 = scmp.ne.s32.totalorder %s36, %s37
      %p48 = scmp.eq.s32.totalorder %s28, 0
      %p49 = por %p47, %p48
      %p50 = scmp.ne.s32.totalorder %s36, %s37
      %p51 = scmp.eq.s32.totalorder %s29, 3
      %p52 = por %p50, %p51
      %p54 = scmp.ne.s32.totalorder %s37, %s53
      %p55 = scmp.eq.s32.totalorder %s29, 0
      %p56 = por %p54, %p55
      %s57 = ssub.s32 %s23, %s30
      %p58 = scmp.eq.s32.totalorder %s57, 0
      %s60 = sadd.s32 %s59, 1
      %s61 = scalar_select %p58, %s59, %s60
      %p64 = pneg %p58
      %p65 = scmp.eq.s32.totalorder %s23, 3
      %p66 = por %p64, %p65
      %p67 = scmp.ne.s32.totalorder %s59, %s62
      %p68 = scmp.eq.s32.totalorder %s23, 0
      %p69 = por %p67, %p68
      %p70 = scmp.ne.s32.totalorder %s59, %s62
      %p71 = scmp.eq.s32.totalorder %s28, 3
      %p72 = por %p70, %p71
      %p73 = scmp.ne.s32.totalorder %s62, %s63
      %p74 = scmp.eq.s32.totalorder %s28, 0
      %p75 = por %p73, %p74
      %p76 = scmp.ne.s32.totalorder %s62, %s63
      %p77 = scmp.eq.s32.totalorder %s29, 3
      %p78 = por %p76, %p77
      %p80 = scmp.ne.s32.totalorder %s63, %s79
      %p81 = scmp.eq.s32.totalorder %s29, 0
      %p82 = por %p80, %p81
      %s84 = sadd.s32 %s83, 1
      %p87 = scmp.eq.s32.totalorder %s23, 3
      %p88 = scmp.ne.s32.totalorder %s83, %s85
      %p89 = scmp.eq.s32.totalorder %s23, 0
      %p90 = por %p88, %p89
      %p91 = scmp.ne.s32.totalorder %s83, %s85
      %p92 = scmp.eq.s32.totalorder %s28, 3
      %p93 = por %p91, %p92
      %p94 = scmp.ne.s32.totalorder %s85, %s86
      %p95 = scmp.eq.s32.totalorder %s28, 0
      %p96 = por %p94, %p95
      %p97 = scmp.ne.s32.totalorder %s85, %s86
      %p98 = scmp.eq.s32.totalorder %s29, 3
      %p99 = por %p97, %p98
      %p101 = scmp.ne.s32.totalorder %s86, %s100
      %p102 = scmp.eq.s32.totalorder %s29, 0
      %p103 = por %p101, %p102
      %s105 = sadd.s32 %s104, 1
      %p108 = scmp.eq.s32.totalorder %s23, 3
      %p109 = scmp.ne.s32.totalorder %s104, %s106
      %p110 = scmp.eq.s32.totalorder %s23, 0
      %p111 = por %p109, %p110
      %p112 = scmp.ne.s32.totalorder %s104, %s106
      %p113 = scmp.eq.s32.totalorder %s28, 3
      %p114 = por %p112, %p113
      %p115 = scmp.ne.s32.totalorder %s106, %s107
      %p116 = scmp.eq.s32.totalorder %s28, 0
      %p117 = por %p115, %p116
      %p118 = scmp.ne.s32.totalorder %s106, %s107
      %p119 = scmp.eq.s32.totalorder %s29, 3
      %p120 = por %p118, %p119
      %p122 = scmp.ne.s32.totalorder %s107, %s121
      %p123 = scmp.eq.s32.totalorder %s29, 0
      %p124 = por %p122, %p123
      %s126 = sadd.s32 %s125, 1
      %p129 = scmp.eq.s32.totalorder %s23, 3
      %p130 = scmp.ne.s32.totalorder %s125, %s127
      %p131 = scmp.eq.s32.totalorder %s23, 0
      %p132 = por %p130, %p131
      %p133 = scmp.ne.s32.totalorder %s125, %s127
      %p134 = scmp.eq.s32.totalorder %s28, 3
      %p135 = por %p133, %p134
      %p136 = scmp.ne.s32.totalorder %s127, %s128
      %p137 = scmp.eq.s32.totalorder %s28, 0
      %p138 = por %p136, %p137
      %p139 = scmp.ne.s32.totalorder %s127, %s128
      %p140 = scmp.eq.s32.totalorder %s29, 3
      %p141 = por %p139, %p140
      %p143 = scmp.ne.s32.totalorder %s128, %s142
      %p144 = scmp.eq.s32.totalorder %s29, 0
      %p145 = por %p143, %p144
      %s147 = sadd.s32 %s146, 1
      %p150 = scmp.eq.s32.totalorder %s23, 3
      %p151 = scmp.ne.s32.totalorder %s146, %s148
      %p152 = scmp.eq.s32.totalorder %s23, 0
      %p153 = por %p151, %p152
      %p154 = scmp.ne.s32.totalorder %s146, %s148
      %p155 = scmp.eq.s32.totalorder %s28, 3
      %p156 = por %p154, %p155
      %p157 = scmp.ne.s32.totalorder %s148, %s149
      %p158 = scmp.eq.s32.totalorder %s28, 0
      %p159 = por %p157, %p158
      %p160 = scmp.ne.s32.totalorder %s148, %s149
      %p161 = scmp.eq.s32.totalorder %s29, 3
      %p162 = por %p160, %p161
      %p164 = scmp.ne.s32.totalorder %s149, %s163
      %p165 = scmp.eq.s32.totalorder %s29, 0
      %p166 = por %p164, %p165
      %s168 = sadd.s32 %s167, 1
      %p171 = scmp.eq.s32.totalorder %s23, 3
      %p172 = scmp.ne.s32.totalorder %s167, %s169
      %p173 = scmp.eq.s32.totalorder %s23, 0
      %p174 = por %p172, %p173
      %p175 = scmp.ne.s32.totalorder %s167, %s169
      %p176 = scmp.eq.s32.totalorder %s28, 3
      %p177 = por %p175, %p176
      %p178 = scmp.ne.s32.totalorder %s169, %s170
      %p179 = scmp.eq.s32.totalorder %s28, 0
      %p180 = por %p178, %p179
      %p181 = scmp.ne.s32.totalorder %s169, %s170
      %p182 = scmp.eq.s32.totalorder %s29, 3
      %p183 = por %p181, %p182
      %p185 = scmp.ne.s32.totalorder %s170, %s184
      %p186 = scmp.eq.s32.totalorder %s29, 0
      %p187 = por %p185, %p186
      %s189 = sadd.s32 %s188, 1
      %p192 = scmp.eq.s32.totalorder %s23, 3
      %p193 = scmp.ne.s32.totalorder %s188, %s190
      %p194 = scmp.eq.s32.totalorder %s23, 0
      %p195 = por %p193, %p194
      %p196 = scmp.ne.s32.totalorder %s188, %s190
      %p197 = scmp.eq.s32.totalorder %s28, 3
      %p198 = por %p196, %p197
      %p199 = scmp.ne.s32.totalorder %s190, %s191
      %p200 = scmp.eq.s32.totalorder %s28, 0
      %p201 = por %p199, %p200
      %p202 = scmp.ne.s32.totalorder %s190, %s191
      %p203 = scmp.eq.s32.totalorder %s29, 3
      %p204 = por %p202, %p203
      %p206 = scmp.ne.s32.totalorder %s191, %s205
      %p207 = scmp.eq.s32.totalorder %s29, 0
      %p208 = por %p206, %p207
      %s210 = sadd.s32 %s209, 1
      %p213 = scmp.eq.s32.totalorder %s23, 3
      %p214 = scmp.ne.s32.totalorder %s209, %s211
      %p215 = scmp.eq.s32.totalorder %s23, 0
      %p216 = por %p214, %p215
      %p217 = scmp.ne.s32.totalorder %s209, %s211
      %p218 = scmp.eq.s32.totalorder %s28, 3
      %p219 = por %p217, %p218
      %p220 = scmp.ne.s32.totalorder %s211, %s212
      %p221 = scmp.eq.s32.totalorder %s28, 0
      %p222 = por %p220, %p221
      %p223 = scmp.ne.s32.totalorder %s211, %s212
      %p224 = scmp.eq.s32.totalorder %s29, 3
      %p225 = por %p223, %p224
      %p227 = scmp.ne.s32.totalorder %s212, %s226
      %p228 = scmp.eq.s32.totalorder %s29, 0
      %p229 = por %p227, %p228
      %s231 = sadd.s32 %s230, 1
      %p234 = scmp.eq.s32.totalorder %s23, 3
      %p235 = scmp.ne.s32.totalorder %s230, %s232
      %p236 = scmp.eq.s32.totalorder %s23, 0
      %p237 = por %p235, %p236
      %p238 = scmp.ne.s32.totalorder %s230, %s232
      %p239 = scmp.eq.s32.totalorder %s28, 3
      %p240 = por %p238, %p239
      %p241 = scmp.ne.s32.totalorder %s232, %s233
      %p242 = scmp.eq.s32.totalorder %s28, 0
      %p243 = por %p241, %p242
      %p244 = scmp.ne.s32.totalorder %s232, %s233
      %p245 = scmp.eq.s32.totalorder %s29, 3
      %p246 = por %p244, %p245
      %p248 = scmp.ne.s32.totalorder %s233, %s247
      %p249 = scmp.eq.s32.totalorder %s29, 0
      %p250 = por %p248, %p249
      %s251 = ssub.s32 %s23, %s30
      %p252 = scmp.eq.s32.totalorder %s251, 0
      %s254 = sadd.s32 %s253, 1
      %s255 = scalar_select %p252, %s253, %s254
      %p258 = pneg %p252
      %p259 = scmp.eq.s32.totalorder %s23, 3
      %p260 = por %p258, %p259
      %p261 = scmp.ne.s32.totalorder %s253, %s256
      %p262 = scmp.eq.s32.totalorder %s23, 0
      %p263 = por %p261, %p262
      %p264 = scmp.ne.s32.totalorder %s253, %s256
      %p265 = scmp.eq.s32.totalorder %s28, 3
      %p266 = por %p264, %p265
      %p267 = scmp.ne.s32.totalorder %s256, %s257
      %p268 = scmp.eq.s32.totalorder %s28, 0
      %p269 = por %p267, %p268
      %p270 = scmp.ne.s32.totalorder %s256, %s257
      %p271 = scmp.eq.s32.totalorder %s29, 3
      %p272 = por %p270, %p271
      %p274 = scmp.ne.s32.totalorder %s257, %s273
      %p275 = scmp.eq.s32.totalorder %s29, 0
      %p276 = por %p274, %p275
      %p277 = scmp.le.s32.totalorder 1, %s23
      %p278 = scmp.lt.s32.totalorder %s23, 5
      %p279 = pnand %p277, %p278
      %p280 = pneg %p279
      // Predicated region
      $region9: #{tpu_custom_call.1} parent=5 // pred_check
        _
      $region10: #{tpu_custom_call.1} parent=5 // pred_check_branch
        %282 = sbr.rel (%p279) target = $region12
      $region11: #{tpu_custom_call.1} parent=5 // pred_region
        %s283 = ssub.s32 %s23, 1
        // Predicated region
        $region13: #{tpu_custom_call.1} parent=11 // pred_check
          %p284 = pneg %p96
        $region14: #{tpu_custom_call.1} parent=11 // pred_check_branch
          %286 = sbr.rel (%p284) target = $region16
        $region15: #{tpu_custom_call.1} parent=11 // pred_region
          _
        $region16: #{tpu_custom_call.1} parent=11 // pred_fallthru
          _
        // Predicated region
        $region17: #{tpu_custom_call.1} parent=11 // pred_check
          %p287 = pneg %p117
        $region18: #{tpu_custom_call.1} parent=11 // pred_check_branch
          %289 = sbr.rel (%p287) target = $region20
        $region19: #{tpu_custom_call.1} parent=11 // pred_region
          _
        $region20: #{tpu_custom_call.1} parent=11 // pred_fallthru
          _
        // Predicated region
        $region21: #{tpu_custom_call.1} parent=11 // pred_check
          %p290 = pneg %p138
        $region22: #{tpu_custom_call.1} parent=11 // pred_check_branch
          %292 = sbr.rel (%p290) target = $region24
        $region23: #{tpu_custom_call.1} parent=11 // pred_region
          _
        $region24: #{tpu_custom_call.1} parent=11 // pred_fallthru
          _
        // Predicated region
        $region25: #{tpu_custom_call.1} parent=11 // pred_check
          %p293 = pneg %p159
        $region26: #{tpu_custom_call.1} parent=11 // pred_check_branch
          %295 = sbr.rel (%p293) target = $region28
        $region27: #{tpu_custom_call.1} parent=11 // pred_region
          _
        $region28: #{tpu_custom_call.1} parent=11 // pred_fallthru
          _
        // Predicated region
        $region29: #{tpu_custom_call.1} parent=11 // pred_check
          %p296 = pneg %p180
        $region30: #{tpu_custom_call.1} parent=11 // pred_check_branch
          %298 = sbr.rel (%p296) target = $region32
        $region31: #{tpu_custom_call.1} parent=11 // pred_region
          %s300 = ssub.s32 512, 512
          %301 = vsyncadd [#allocation6], %s300
          %s302 = sshll.u32 [#allocation5], 4
          %s303 = int_to_ptr.vmem [resolvable:$true] %s302
          %308 = dma.hbm_to_vmem [thread:$0]  %s6, 512, %s303, [#allocation6], 128, 128, 8
        $region32: #{tpu_custom_call.1} parent=11 // pred_fallthru
          _
        // Predicated region
        $region33: #{tpu_custom_call.1} parent=11 // pred_check
          %p309 = pneg %p201
        $region34: #{tpu_custom_call.1} parent=11 // pred_check_branch
          %311 = sbr.rel (%p309) target = $region36
        $region35: #{tpu_custom_call.1} parent=11 // pred_region
          _
        $region36: #{tpu_custom_call.1} parent=11 // pred_fallthru
          _
        // Predicated region
        $region37: #{tpu_custom_call.1} parent=11 // pred_check
          %p312 = pneg %p222
        $region38: #{tpu_custom_call.1} parent=11 // pred_check_branch
          %314 = sbr.rel (%p312) target = $region40
        $region39: #{tpu_custom_call.1} parent=11 // pred_region
          _
        $region40: #{tpu_custom_call.1} parent=11 // pred_fallthru
          _
        // Predicated region
        $region41: #{tpu_custom_call.1} parent=11 // pred_check
          %p315 = pneg %p243
        $region42: #{tpu_custom_call.1} parent=11 // pred_check_branch
          %317 = sbr.rel (%p315) target = $region44
        $region43: #{tpu_custom_call.1} parent=11 // pred_region
          _
        $region44: #{tpu_custom_call.1} parent=11 // pred_fallthru
          _
      $region12: #{tpu_custom_call.1} parent=5 // pred_fallthru
        _
      %p318 = scmp.lt.s32.totalorder %s23, 4
      // Predicated region
      $region45: #{tpu_custom_call.1} parent=5 // pred_check
        %p319 = pneg %p318
      $region46: #{tpu_custom_call.1} parent=5 // pred_check_branch
        %321 = sbr.rel (%p319) target = $region48
      $region47: #{tpu_custom_call.1} parent=5 // pred_region
        // Predicated region
        $region49: #{tpu_custom_call.1} parent=47 // pred_check
          %p322 = pneg %p43
        $region50: #{tpu_custom_call.1} parent=47 // pred_check_branch
          %324 = sbr.rel (%p322) target = $region52
        $region51: #{tpu_custom_call.1} parent=47 // pred_region
          %p325 = scmp.lt.s32.totalorder %s23, 3
          %s326 = scalar_select %p325, %s23, 3
          %s327 = smul.addr %s326, 8
          %s328 = scalar_lea.vmem %s0, %s327
        $region52: #{tpu_custom_call.1} parent=47 // pred_fallthru
          _
        // Predicated region
        $region53: #{tpu_custom_call.1} parent=47 // pred_check
          %p329 = pneg %p69
        $region54: #{tpu_custom_call.1} parent=47 // pred_check_branch
          %331 = sbr.rel (%p329) target = $region56
        $region55: #{tpu_custom_call.1} parent=47 // pred_region
          %s332 = sand.u32 %s59, 1
          %s333 = scalar_lea.sflag [#allocation3], %s332
          %s334 = sand.u32 %s59, 1
          %s335 = smul.addr %s334, 8
          %s336 = scalar_lea.vmem [#allocation2], %s335
          %s338 = ssub.s32 128, 128
          %339 = vsyncadd %s333, %s338
          %s340 = smul.addr %s23, 128
          %s341 = scalar_lea.hbm %s1, %s340
          %s343 = sshll.u32 %s336, 4
          %s344 = int_to_ptr.vmem [resolvable:$true] %s343
          %346 = dma.hbm_to_vmem [thread:$0]  %s341, 128, %s344, %s333
        $region56: #{tpu_custom_call.1} parent=47 // pred_fallthru
          _
      $region48: #{tpu_custom_call.1} parent=5 // pred_fallthru
        _
      %p347 = scmp.le.s32.totalorder 1, %s23
      %p348 = scmp.lt.s32.totalorder %s23, 5
      %p349 = pnand %p347, %p348
      %p350 = pneg %p349
      // Predicated region
      $region57: #{tpu_custom_call.1} parent=5 // pred_check
        _
      $region58: #{tpu_custom_call.1} parent=5 // pred_check_branch
        %352 = sbr.rel (%p349) target = $region60
      $region59: #{tpu_custom_call.1} parent=5 // pred_region
        %s353 = ssub.s32 %s23, 1
        %s354 = sand.u32 %s62, 1
        %s355 = scalar_lea.sflag [#allocation3], %s354
        %s356 = sand.u32 %s62, 1
        %s357 = smul.addr %s356, 8
        %s358 = scalar_lea.vmem [#allocation2], %s357
        // Predicated region
        $region61: #{tpu_custom_call.1} parent=59 // pred_check
          %p359 = pneg %p75
        $region62: #{tpu_custom_call.1} parent=59 // pred_check_branch
          %361 = sbr.rel (%p359) target = $region64
        $region63: #{tpu_custom_call.1} parent=59 // pred_region
          %362 = dma.done %s355, 128
        $region64: #{tpu_custom_call.1} parent=59 // pred_fallthru
          _
        // Predicated region
        $region65: #{tpu_custom_call.1} parent=59 // pred_check
          %p363 = pneg %p180
        $region66: #{tpu_custom_call.1} parent=59 // pred_check_branch
          %365 = sbr.rel (%p363) target = $region68
        $region67: #{tpu_custom_call.1} parent=59 // pred_region
          %366 = dma.done [#allocation6], 512
        $region68: #{tpu_custom_call.1} parent=59 // pred_fallthru
          _
        %p367 = scmp.lt.s32.totalorder %s28, 3
        %s368 = scalar_select %p367, %s28, 3
        %s369 = smul.addr %s368, 8
        %s370 = scalar_lea.vmem %s0, %s369
        %p371 = pneg %p49
        %p372 = pneg %p46
        %s373 = sand.u32 %s62, 1
        %s374 = scalar_lea.sflag [#allocation3], %s373
        %s375 = sand.u32 %s62, 1
        %s376 = smul.addr %s375, 8
        %s377 = scalar_lea.vmem [#allocation2], %s376
        %p378 = pneg %p75
        %p379 = pneg %p72
        %p380 = pneg %p96
        %p381 = pneg %p93
        %p382 = pneg %p117
        %p383 = pneg %p114
        %p384 = pneg %p138
        %p385 = pneg %p135
        %p386 = pneg %p159
        %p387 = pneg %p156
        %p388 = pneg %p180
        %p389 = pneg %p177
        %p390 = pneg %p201
        %p391 = pneg %p198
        %p392 = pneg %p222
        %p393 = pneg %p219
        %p394 = pneg %p243
        %p395 = pneg %p240
        %p396 = pneg %p269
        %p397 = pneg %p266
        %s398 = sand.u32 %s256, 1
        %s399 = scalar_lea.sflag [#allocation4], %s398
        %s400 = sand.u32 %s256, 1
        %s401 = smul.addr %s400, 8
        %s402 = scalar_lea.vmem [#allocation7], %s401
        %p403 = scmp.lt.s32.totalorder %s28, 3
        %s404 = scalar_select %p403, %s28, 3
        %s405 = smul.addr %s404, 8
        %s406 = scalar_lea.vmem %s0, %s405
        %v407 = vld [vmem:[%s406] sm:$0xff]
        %v408 = vld [vmem:[%s2] sm:$0xff]
        %v409 = vld [vmem:[%s2 + $0x8] sm:$0xff]
        %v410 = vld [vmem:[%s2 + $0x10] sm:$0xff]
        %v411 = vld [vmem:[%s2 + $0x18] sm:$0xff]
        %v412 = vld [vmem:[%s2 + $0x20] sm:$0xff]
        %v413 = vld [vmem:[%s2 + $0x28] sm:$0xff]
        %v414 = vld [vmem:[%s2 + $0x30] sm:$0xff]
        %v415 = vld [vmem:[%s2 + $0x38] sm:$0xff]
        %v416 = vld [vmem:[%s2 + $0x40] sm:$0xff]
        %v417 = vld [vmem:[%s2 + $0x48] sm:$0xff]
        %v418 = vld [vmem:[%s2 + $0x50] sm:$0xff]
        %v419 = vld [vmem:[%s2 + $0x58] sm:$0xff]
        %v420 = vld [vmem:[%s2 + $0x60] sm:$0xff]
        %v421 = vld [vmem:[%s2 + $0x68] sm:$0xff]
        %v422 = vld [vmem:[%s2 + $0x70] sm:$0xff]
        %v423 = vld [vmem:[%s2 + $0x78] sm:$0xff]
        %v424 = vld [vmem:[%s3] sm:$0x1]
        %v426 = vlaneseq
        %v427 = vshrl.u32 %v426, 7
        %v428 = vsub.s32 0, %v427
        %v429 = vrot.slane %v424, %v428
        %431 = vmatprep.subr.mxu0 0.0
        %432 = vmatpush1.msra.mxu0 %v408
        %433 = vmatprep.subr.mxu0 0.0
        %434 = vmatpush1.msra.mxu0 %v409
        %435 = vmatprep.subr.mxu0 0.0
        %436 = vmatpush1.msra.mxu0 %v410
        %437 = vmatprep.subr.mxu0 0.0
        %438 = vmatpush1.msra.mxu0 %v411
        %439 = vmatprep.subr.mxu0 0.0
        %440 = vmatpush1.msra.mxu0 %v412
        %441 = vmatprep.subr.mxu0 0.0
        %442 = vmatpush1.msra.mxu0 %v413
        %443 = vmatprep.subr.mxu0 0.0
        %444 = vmatpush1.msra.mxu0 %v414
        %445 = vmatprep.subr.mxu0 0.0
        %446 = vmatpush1.msra.mxu0 %v415
        %447 = vmatprep.subr.mxu0 0.0
        %448 = vmatpush1.msra.mxu0 %v416
        %449 = vmatprep.subr.mxu0 0.0
        %450 = vmatpush1.msra.mxu0 %v417
        %451 = vmatprep.subr.mxu0 0.0
        %452 = vmatpush1.msra.mxu0 %v418
        %453 = vmatprep.subr.mxu0 0.0
        %454 = vmatpush1.msra.mxu0 %v419
        %455 = vmatprep.subr.mxu0 0.0
        %456 = vmatpush1.msra.mxu0 %v420
        %457 = vmatprep.subr.mxu0 0.0
        %458 = vmatpush1.msra.mxu0 %v421
        %459 = vmatprep.subr.mxu0 0.0
        %460 = vmatpush1.msra.mxu0 %v422
        %461 = vmatprep.subr.mxu0 0.0
        %462 = vmatpush1.msra.mxu0 %v423
        %463 = vmatprep.subr.mxu0 0.0
        %464 = vmatpush1.msra.mxu0 0.0
        %465 = vmatprep.subr.mxu0 0.0
        %466 = vmatpush1.msra.mxu0 0.0
        %467 = vmatprep.subr.mxu0 0.0
        %468 = vmatpush1.msra.mxu0 0.0
        %469 = vmatprep.subr.mxu0 0.0
        %470 = vmatpush1.msra.mxu0 0.0
        %471 = vmatprep.subr.mxu0 0.0
        %472 = vmatpush1.msra.mxu0 0.0
        %473 = vmatprep.subr.mxu0 0.0
        %474 = vmatpush1.msra.mxu0 0.0
        %475 = vmatprep.subr.mxu0 0.0
        %476 = vmatpush1.msra.mxu0 0.0
        %477 = vmatprep.subr.mxu0 0.0
        %478 = vmatpush1.msra.mxu0 0.0
        %479 = vmatprep.subr.mxu0 0.0
        %480 = vmatpush1.msra.mxu0 0.0
        %481 = vmatprep.subr.mxu0 0.0
        %482 = vmatpush1.msra.mxu0 0.0
        %483 = vmatprep.subr.mxu0 0.0
        %484 = vmatpush1.msra.mxu0 0.0
        %485 = vmatprep.subr.mxu0 0.0
        %486 = vmatpush1.msra.mxu0 0.0
        %487 = vmatprep.subr.mxu0 0.0
        %488 = vmatpush1.msra.mxu0 0.0
        %489 = vmatprep.subr.mxu0 0.0
        %490 = vmatpush1.msra.mxu0 0.0
        %491 = vmatprep.subr.mxu0 0.0
        %492 = vmatpush1.msra.mxu0 0.0
        %493 = vmatprep.subr.mxu0 0.0
        %494 = vmatpush1.msra.mxu0 0.0
        %495 = vmatprep.mubr.f32.mxu0 0.0
        %496 = vmatmul.mubr.f32.gmra.mrb[0].mxu0 %v407
        %v497 = vpop.f32.mrb[0].mxu0
        %v498 = vadd.f32 %v429, %v497
        %v499 = vpop.f32.mrb[0].mxu0
        %500 = vdwg.mxu0
        %v501 = vld [vmem:[%s4] sm:$0xff]
        %v502 = vld [vmem:[%s4 + $0x8] sm:$0xff]
        %v503 = vld [vmem:[%s4 + $0x10] sm:$0xff]
        %v504 = vld [vmem:[%s4 + $0x18] sm:$0xff]
        %v505 = vld [vmem:[%s4 + $0x20] sm:$0xff]
        %v506 = vld [vmem:[%s4 + $0x28] sm:$0xff]
        %v507 = vld [vmem:[%s4 + $0x30] sm:$0xff]
        %v508 = vld [vmem:[%s4 + $0x38] sm:$0xff]
        %v509 = vld [vmem:[%s4 + $0x40] sm:$0xff]
        %v510 = vld [vmem:[%s4 + $0x48] sm:$0xff]
        %v511 = vld [vmem:[%s4 + $0x50] sm:$0xff]
        %v512 = vld [vmem:[%s4 + $0x58] sm:$0xff]
        %v513 = vld [vmem:[%s4 + $0x60] sm:$0xff]
        %v514 = vld [vmem:[%s4 + $0x68] sm:$0xff]
        %v515 = vld [vmem:[%s4 + $0x70] sm:$0xff]
        %v516 = vld [vmem:[%s4 + $0x78] sm:$0xff]
        %v517 = vld [vmem:[%s5] sm:$0x1]
        %v519 = vlaneseq
        %v520 = vshrl.u32 %v519, 7
        %v521 = vsub.s32 0, %v520
        %v522 = vrot.slane %v517, %v521
        %524 = vmatprep.subr.mxu0 0.0
        %525 = vmatpush1.msra.mxu0 %v501
        %526 = vmatprep.subr.mxu0 0.0
        %527 = vmatpush1.msra.mxu0 %v502
        %528 = vmatprep.subr.mxu0 0.0
        %529 = vmatpush1.msra.mxu0 %v503
        %530 = vmatprep.subr.mxu0 0.0
        %531 = vmatpush1.msra.mxu0 %v504
        %532 = vmatprep.subr.mxu0 0.0
        %533 = vmatpush1.msra.mxu0 %v505
        %534 = vmatprep.subr.mxu0 0.0
        %535 = vmatpush1.msra.mxu0 %v506
        %536 = vmatprep.subr.mxu0 0.0
        %537 = vmatpush1.msra.mxu0 %v507
        %538 = vmatprep.subr.mxu0 0.0
        %539 = vmatpush1.msra.mxu0 %v508
        %540 = vmatprep.subr.mxu0 0.0
        %541 = vmatpush1.msra.mxu0 %v509
        %542 = vmatprep.subr.mxu0 0.0
        %543 = vmatpush1.msra.mxu0 %v510
        %544 = vmatprep.subr.mxu0 0.0
        %545 = vmatpush1.msra.mxu0 %v511
        %546 = vmatprep.subr.mxu0 0.0
        %547 = vmatpush1.msra.mxu0 %v512
        %548 = vmatprep.subr.mxu0 0.0
        %549 = vmatpush1.msra.mxu0 %v513
        %550 = vmatprep.subr.mxu0 0.0
        %551 = vmatpush1.msra.mxu0 %v514
        %552 = vmatprep.subr.mxu0 0.0
        %553 = vmatpush1.msra.mxu0 %v515
        %554 = vmatprep.subr.mxu0 0.0
        %555 = vmatpush1.msra.mxu0 %v516
        %556 = vmatprep.subr.mxu0 0.0
        %557 = vmatpush1.msra.mxu0 0.0
        %558 = vmatprep.subr.mxu0 0.0
        %559 = vmatpush1.msra.mxu0 0.0
        %560 = vmatprep.subr.mxu0 0.0
        %561 = vmatpush1.msra.mxu0 0.0
        %562 = vmatprep.subr.mxu0 0.0
        %563 = vmatpush1.msra.mxu0 0.0
        %564 = vmatprep.subr.mxu0 0.0
        %565 = vmatpush1.msra.mxu0 0.0
        %566 = vmatprep.subr.mxu0 0.0
        %567 = vmatpush1.msra.mxu0 0.0
        %568 = vmatprep.subr.mxu0 0.0
        %569 = vmatpush1.msra.mxu0 0.0
        %570 = vmatprep.subr.mxu0 0.0
        %571 = vmatpush1.msra.mxu0 0.0
        %572 = vmatprep.subr.mxu0 0.0
        %573 = vmatpush1.msra.mxu0 0.0
        %574 = vmatprep.subr.mxu0 0.0
        %575 = vmatpush1.msra.mxu0 0.0
        %576 = vmatprep.subr.mxu0 0.0
        %577 = vmatpush1.msra.mxu0 0.0
        %578 = vmatprep.subr.mxu0 0.0
        %579 = vmatpush1.msra.mxu0 0.0
        %580 = vmatprep.subr.mxu0 0.0
        %581 = vmatpush1.msra.mxu0 0.0
        %582 = vmatprep.subr.mxu0 0.0
        %583 = vmatpush1.msra.mxu0 0.0
        %584 = vmatprep.subr.mxu0 0.0
        %585 = vmatpush1.msra.mxu0 0.0
        %586 = vmatprep.subr.mxu0 0.0
        %587 = vmatpush1.msra.mxu0 0.0
        %588 = vmatprep.mubr.f32.mxu0 0.0
        %589 = vmatmul.mubr.f32.gmra.mrb[0].mxu0 %v498
        %v590 = vpop.f32.mrb[0].mxu0
        %v591 = vadd.f32 %v522, %v590
        %v592 = vpop.f32.mrb[0].mxu0
        %593 = vdwg.mxu0
        %v594 = vmax.f32 %v591, 0.0
        %v595 = vld [vmem:[#allocation5] sm:$0xff]
        %v596 = vld [vmem:[#allocation5 + $0x8] sm:$0xff]
        %v597 = vld [vmem:[#allocation5 + $0x10] sm:$0xff]
        %v598 = vld [vmem:[#allocation5 + $0x18] sm:$0xff]
        %v599 = vld [vmem:[%s7] sm:$0x1]
        %v601 = vlaneseq
        %v602 = vshrl.u32 %v601, 7
        %v603 = vsub.s32 0, %v602
        %v604 = vrot.slane %v599, %v603
        %vm606 = vcmask 261120
        %v608 = vsel %vm606, %v594, 0
        %610 = vmatprep.subr.mxu0 0.0
        %611 = vmatpush1.msra.mxu0 %v595
        %612 = vmatprep.subr.mxu0 0.0
        %613 = vmatpush1.msra.mxu0 %v596
        %614 = vmatprep.subr.mxu0 0.0
        %615 = vmatpush1.msra.mxu0 %v597
        %616 = vmatprep.subr.mxu0 0.0
        %617 = vmatpush1.msra.mxu0 %v598
        %618 = vmatprep.subr.mxu0 0.0
        %619 = vmatpush1.msra.mxu0 0.0
        %620 = vmatprep.subr.mxu0 0.0
        %621 = vmatpush1.msra.mxu0 0.0
        %622 = vmatprep.subr.mxu0 0.0
        %623 = vmatpush1.msra.mxu0 0.0
        %624 = vmatprep.subr.mxu0 0.0
        %625 = vmatpush1.msra.mxu0 0.0
        %626 = vmatprep.subr.mxu0 0.0
        %627 = vmatpush1.msra.mxu0 0.0
        %628 = vmatprep.subr.mxu0 0.0
        %629 = vmatpush1.msra.mxu0 0.0
        %630 = vmatprep.subr.mxu0 0.0
        %631 = vmatpush1.msra.mxu0 0.0
        %632 = vmatprep.subr.mxu0 0.0
        %633 = vmatpush1.msra.mxu0 0.0
        %634 = vmatprep.subr.mxu0 0.0
        %635 = vmatpush1.msra.mxu0 0.0
        %636 = vmatprep.subr.mxu0 0.0
        %637 = vmatpush1.msra.mxu0 0.0
        %638 = vmatprep.subr.mxu0 0.0
        %639 = vmatpush1.msra.mxu0 0.0
        %640 = vmatprep.subr.mxu0 0.0
        %641 = vmatpush1.msra.mxu0 0.0
        %642 = vmatprep.subr.mxu0 0.0
        %643 = vmatpush1.msra.mxu0 0.0
        %644 = vmatprep.subr.mxu0 0.0
        %645 = vmatpush1.msra.mxu0 0.0
        %646 = vmatprep.subr.mxu0 0.0
        %647 = vmatpush1.msra.mxu0 0.0
        %648 = vmatprep.subr.mxu0 0.0
        %649 = vmatpush1.msra.mxu0 0.0
        %650 = vmatprep.subr.mxu0 0.0
        %651 = vmatpush1.msra.mxu0 0.0
        %652 = vmatprep.subr.mxu0 0.0
        %653 = vmatpush1.msra.mxu0 0.0
        %654 = vmatprep.subr.mxu0 0.0
        %655 = vmatpush1.msra.mxu0 0.0
        %656 = vmatprep.subr.mxu0 0.0
        %657 = vmatpush1.msra.mxu0 0.0
        %658 = vmatprep.subr.mxu0 0.0
        %659 = vmatpush1.msra.mxu0 0.0
        %660 = vmatprep.subr.mxu0 0.0
        %661 = vmatpush1.msra.mxu0 0.0
        %662 = vmatprep.subr.mxu0 0.0
        %663 = vmatpush1.msra.mxu0 0.0
        %664 = vmatprep.subr.mxu0 0.0
        %665 = vmatpush1.msra.mxu0 0.0
        %666 = vmatprep.subr.mxu0 0.0
        %667 = vmatpush1.msra.mxu0 0.0
        %668 = vmatprep.subr.mxu0 0.0
        %669 = vmatpush1.msra.mxu0 0.0
        %670 = vmatprep.subr.mxu0 0.0
        %671 = vmatpush1.msra.mxu0 0.0
        %672 = vmatprep.subr.mxu0 0.0
        %673 = vmatpush1.msra.mxu0 0.0
        %674 = vmatprep.mubr.f32.mxu0 0.0
        %675 = vmatmul.mubr.f32.gmra.mrb[0].mxu0 %v608
        %v676 = vpop.f32.mrb[0].mxu0
        %v677 = vadd.f32 %v604, %v676
        %v678 = vpop.f32.mrb[0].mxu0
        %679 = vdwg.mxu0
        %v680 = vadd.f32 %v498, %v677
        %v681 = vld [vmem:[%s358] sm:$0xff]
        %v682 = vadd.f32 %v680, %v681
        %683 = vadd.xlane.f32.xlu0 %v682
        %v684 = vpop.xlane.xlu0 %683
        %v685 = vrcp.pop 128.0
        %v686 = vmul.f32 %v684, %v685
        %v687 = vsub.f32 %v682, %v686
        %v688 = vmul.f32 %v687, %v687
        %689 = vadd.xlane.f32.xlu0 %v688
        %v690 = vpop.xlane.xlu0 %689
        %v691 = vmul.f32 %v690, %v685
        %v692 = vadd.f32 %v691, 1e-12
        %v693 = vrsqrt.pop %v692
        %v694 = vmul.f32 %v687, %v693
        %v695 = vld [vmem:[%s8] sm:$0x1]
        %v697 = vlaneseq
        %v698 = vshrl.u32 %v697, 7
        %v699 = vsub.s32 0, %v698
        %v700 = vrot.slane %v695, %v699
        %v702 = vmul.f32 %v694, %v700
        %v703 = vld [vmem:[%s9] sm:$0x1]
        %v705 = vlaneseq
        %v706 = vshrl.u32 %v705, 7
        %v707 = vsub.s32 0, %v706
        %v708 = vrot.slane %v703, %v707
        %v710 = vadd.f32 %v702, %v708
        %711 = vst [vmem:[%s402] sm:$0xff] %v710
        %s712 = sand.u32 %s256, 1
        %s713 = scalar_lea.sflag [#allocation4], %s712
        %s714 = sand.u32 %s256, 1
        %s715 = smul.addr %s714, 8
        %s716 = scalar_lea.vmem [#allocation7], %s715
        // Predicated region
        $region69: #{tpu_custom_call.1} parent=59 // pred_check
          %p717 = pneg %p266
        $region70: #{tpu_custom_call.1} parent=59 // pred_check_branch
          %719 = sbr.rel (%p717) target = $region72
        $region71: #{tpu_custom_call.1} parent=59 // pred_region
          %s721 = ssub.s32 128, 128
          %722 = vsyncadd %s713, %s721
          %s723 = smul.addr %s28, 128
          %s724 = scalar_lea.hbm %s10, %s723
          %s726 = sshll.u32 %s716, 4
          %s727 = int_to_ptr.vmem [resolvable:$true] %s726
          %729 = dma.vmem_to_hbm [thread:$0]  %s727, 128, %s724, %s713
        $region72: #{tpu_custom_call.1} parent=59 // pred_fallthru
          _
      $region60: #{tpu_custom_call.1} parent=5 // pred_fallthru
        _
      %p730 = scmp.le.s32.totalorder 2, %s23
      // Predicated region
      $region73: #{tpu_custom_call.1} parent=5 // pred_check
        %p731 = pneg %p730
      $region74: #{tpu_custom_call.1} parent=5 // pred_check_branch
        %733 = sbr.rel (%p731) target = $region76
      $region75: #{tpu_custom_call.1} parent=5 // pred_region
        %s734 = ssub.s32 %s23, 2
        // Predicated region
        $region77: #{tpu_custom_call.1} parent=75 // pred_check
          %p735 = pneg %p272
        $region78: #{tpu_custom_call.1} parent=75 // pred_check_branch
          %737 = sbr.rel (%p735) target = $region80
        $region79: #{tpu_custom_call.1} parent=75 // pred_region
          %s738 = sand.u32 %s257, 1
          %s739 = scalar_lea.sflag [#allocation4], %s738
          %s740 = sand.u32 %s257, 1
          %s741 = smul.addr %s740, 8
          %s742 = scalar_lea.vmem [#allocation7], %s741
          %743 = dma.done %s739, 128
        $region80: #{tpu_custom_call.1} parent=75 // pred_fallthru
          _
      $region76: #{tpu_custom_call.1} parent=5 // pred_fallthru
        _
    $region6: #{tpu_custom_call.1} parent=1 // loop_footer
      %s27 = sadd.s32 1, %s23
    $region7: #{tpu_custom_call.1} parent=1 // loop_footer_branch
      %22 = sbr.rel target = $region3
    $region8: #{tpu_custom_call.1} parent=1 // loop_exit
      _
    %744 = vsyncpa [#allocation3], 1
    %s745 = scalar_lea.sflag [#allocation3], 1
    %746 = vsyncpa %s745, 1
    %747 = vsyncpa [#allocation6], 1
    %748 = vsyncpa [#allocation4], 1
    %s749 = scalar_lea.sflag [#allocation4], 1
    %750 = vsyncpa %s749, 1

</llo_original>
